<compile_context>
chip_gen: v5e
topology: v5e:2x2
jax: 0.10.0
libtpu: 0.0.40
codegen_flags: <defaults>
</compile_context>

<pallas_src>
import math

import jax
import jax.numpy as jnp
from jax.experimental import pallas as pl
from jax.experimental.pallas import tpu as pltpu


def _round_up(n, m):
    return ((n + m - 1) // m) * m


# ---------------- hot path: out = x_folded @ blockdiag(W_eff^T) + bias_tiled ----------------
def _linear_kernel(x_ref, w_ref, b_ref, o_ref):
    x = x_ref[...].astype(w_ref.dtype)                       # bf16 operands for the MXU
    acc = jnp.dot(x, w_ref[...], preferred_element_type=jnp.float32)
    o_ref[...] = (acc + b_ref[...]).astype(o_ref.dtype)


def dynamic_filter_gnn(x, base_filter, t_weight, t_bias, adjacency, weight, bias,
                       *, gemm_dtype=jnp.bfloat16):
    """x: [..., D] float32. Returns [..., D] float32."""
    orig_shape = x.shape
    D = orig_shape[-1]
    x2d = x.reshape(-1, D).astype(jnp.float32)
    M = x2d.shape[0]

    # ---- tiny effective-weight math in plain XLA (off the hot path) ----
    hi = jax.lax.Precision.HIGHEST
    tf = jnp.dot(base_filter, t_weight.T, precision=hi) + t_bias      # transform(base_filter)
    adj_t = 0.9 * adjacency + 0.1 * tf
    w_eff_t = jnp.dot(adj_t, weight, precision=hi).T                  # W_eff^T, [D, D]

    # ---- lane-density fold: (M, D) -> (M/FOLD, FOLD*D), block-diagonal weight ----
    fold = 1
    for f in (8, 4, 2):
        if M % f == 0:
            fold = f
            break
    Dw = D * fold
    m_f = M // fold
    x_f = x2d.reshape(m_f, Dw)                                # free contiguous reshape

    # blockdiag(W_eff^T, ..., W_eff^T): x_folded @ w_block == per-row x @ W_eff^T
    w_block = jnp.kron(jnp.eye(fold, dtype=w_eff_t.dtype), w_eff_t).astype(gemm_dtype)
    b_tiled = jnp.tile(bias.astype(jnp.float32), fold).reshape(1, Dw)

    # ---- tile sizing: large double-buffered tiles; keep >= 4 grid steps for v7x ----
    budget_bytes = 20 * 1024 * 1024                           # 2 bufs x (x f32 + out f32)
    per_row = 2 * 2 * Dw * 4
    tile_m = max(8, (budget_bytes // per_row) // 8 * 8)
    if m_f <= tile_m:
        tile_m = m_f                                          # single full-extent block
    else:
        tile_m = min(tile_m, max(8, _round_up(pl.cdiv(m_f, 4), 8)))
    grid_m = pl.cdiv(m_f, tile_m)                             # ragged edge block is masked

    out = pl.pallas_call(
        _linear_kernel,
        out_shape=jax.ShapeDtypeStruct((m_f, Dw), jnp.float32),
        grid=(grid_m,),
        in_specs=[
            pl.BlockSpec((tile_m, Dw), lambda i: (i, 0)),     # x tile (pipelined)
            pl.BlockSpec((Dw, Dw), lambda i: (0, 0)),         # block-diag W_eff^T (resident)
            pl.BlockSpec((1, Dw), lambda i: (0, 0)),          # tiled bias (resident)
        ],
        out_specs=pl.BlockSpec((tile_m, Dw), lambda i: (i, 0)),
        compiler_params=pltpu.CompilerParams(
            dimension_semantics=("parallel",),                # shard M over v7x's 2 TCs
            vmem_limit_bytes=48 * 1024 * 1024),               # <= v7x 64 MiB physical VMEM
    )(x_f, w_block, b_tiled)

    return out.reshape(orig_shape)


def _reference(x, base_filter, t_weight, t_bias, adjacency, weight, bias):
    tf = base_filter @ t_weight.T + t_bias
    adj_t = 0.9 * adjacency + 0.1 * tf
    w_eff = adj_t @ weight
    return x @ w_eff.T + bias


if __name__ == "__main__":
    # in_features == out_features is required by the module's own matmul.
    D = 32          # hidden / in_features / out_features
    B, S = 2, 8     # batch, seq

    key = jax.random.PRNGKey(0)
    ks = jax.random.split(key, 7)
    stdv = 1.0 / math.sqrt(D)

    x = jax.random.normal(ks[0], (B, S, D), dtype=jnp.float32)
    base_filter = jax.random.uniform(ks[1], (D, D), jnp.float32, -stdv, stdv)
    weight = jax.random.uniform(ks[2], (D, D), jnp.float32, -stdv, stdv)       # [out, in]
    bias = jax.random.uniform(ks[3], (D,), jnp.float32, -stdv, stdv)
    t_weight = jax.random.uniform(ks[4], (D, D), jnp.float32, -stdv, stdv)     # transform.weight
    t_bias = jax.random.uniform(ks[5], (D,), jnp.float32, -stdv, stdv)         # transform.bias
    adjacency = jax.random.uniform(ks[6], (D, D), jnp.float32, 0.0, 1.0)

    out = dynamic_filter_gnn(x, base_filter, t_weight, t_bias, adjacency, weight, bias)
    out = jax.block_until_ready(out)

    ref = _reference(x, base_filter, t_weight, t_bias, adjacency, weight, bias)
    assert out.shape == (B, S, D)
    # Hot-path GEMM uses bf16 operands with f32 accumulation -> relaxed tolerance
    # versus the pure-f32 reference.
    assert jnp.allclose(out, ref, atol=5e-2, rtol=5e-2), "mismatch vs reference"

    print("KERNEL_OK")
</pallas_src>

<mosaic_0001>
module attributes {stable_mosaic.version = 11 : i64} {
  func.func @_linear_kernel(%arg0: i32, %arg1: memref<2x256xf32, #tpu.memory_space<vmem>>, %arg2: memref<256x256xbf16, #tpu.memory_space<vmem>>, %arg3: memref<1x256xf32, #tpu.memory_space<vmem>>, %arg4: memref<2x256xf32, #tpu.memory_space<vmem>>) attributes {dimension_semantics = [#tpu.dimension_semantics<parallel>], iteration_bounds = array<i64: 1>, scalar_prefetch = 0 : i64, scratch_operands = 0 : i64, tpu.core_type = #tpu.core_type<tc>, window_params = [{transform_indices = @transform_0, window_bounds = array<i64: 2, 256>}, {pipeline_mode = #tpu.pipeline_mode<synchronous>, transform_indices = @transform_1, window_bounds = array<i64: 256, 256>}, {pipeline_mode = #tpu.pipeline_mode<synchronous>, transform_indices = @transform_2, window_bounds = array<i64: 1, 256>}, {transform_indices = @transform_3, window_bounds = array<i64: 2, 256>}]} {
    %c0 = arith.constant 0 : index
    %c0_0 = arith.constant 0 : index
    %0 = vector.load %arg1[%c0, %c0_0] : memref<2x256xf32, #tpu.memory_space<vmem>>, vector<2x256xf32>
    %1 = arith.truncf %0 : vector<2x256xf32> to vector<2x256xbf16>
    %c0_1 = arith.constant 0 : index
    %c0_2 = arith.constant 0 : index
    %2 = vector.load %arg2[%c0_1, %c0_2] : memref<256x256xbf16, #tpu.memory_space<vmem>>, vector<256x256xbf16>
    %cst = arith.constant dense<0.000000e+00> : vector<2x256xf32>
    %3 = tpu.matmul %1, %2, %cst {dimension_numbers = #tpu.dot_dimension_numbers<[1], [0], [0], [1], [0, 0, 1, 1], [], []>} : vector<2x256xbf16>, vector<256x256xbf16>, vector<2x256xf32> -> vector<2x256xf32>
    %c0_3 = arith.constant 0 : index
    %c0_4 = arith.constant 0 : index
    %4 = vector.load %arg3[%c0_3, %c0_4] : memref<1x256xf32, #tpu.memory_space<vmem>>, vector<1x256xf32>
    %5 = vector.broadcast %4 : vector<1x256xf32> to vector<2x256xf32>
    %6 = arith.addf %3, %5 : vector<2x256xf32>
    %c0_5 = arith.constant 0 : index
    %c0_6 = arith.constant 0 : index
    %7 = vector.load %arg4[%c0_5, %c0_6] : memref<2x256xf32, #tpu.memory_space<vmem>>, vector<2x256xf32>
    tpu.vector_store %arg4[%c0_5, %c0_6], %6 {strides = array<i32>} : memref<2x256xf32, #tpu.memory_space<vmem>>, vector<2x256xf32>,
    return
  }
  func.func @transform_0(%arg0: i32) -> (i32, i32) {
    %c0_i32 = arith.constant 0 : i32
    %c0_i32_0 = arith.constant 0 : i32
    return %arg0, %c0_i32 : i32, i32
  }
  func.func @transform_1(%arg0: i32) -> (i32, i32) {
    %c0_i32 = arith.constant 0 : i32
    %c0_i32_0 = arith.constant 0 : i32
    %c0_i32_1 = arith.constant 0 : i32
    return %c0_i32, %c0_i32_0 : i32, i32
  }
  func.func @transform_2(%arg0: i32) -> (i32, i32) {
    %c0_i32 = arith.constant 0 : i32
    %c0_i32_0 = arith.constant 0 : i32
    %c0_i32_1 = arith.constant 0 : i32
    return %c0_i32, %c0_i32_0 : i32, i32
  }
  func.func @transform_3(%arg0: i32) -> (i32, i32) {
    %c0_i32 = arith.constant 0 : i32
    %c0_i32_0 = arith.constant 0 : i32
    return %arg0, %c0_i32 : i32, i32
  }
}

</mosaic_0001>

<llo_original>
// kernel: tpu_custom_call.1
$region0: #{tpu_custom_call.1}
  #allocation0 [shape = 'u32[]', space=smem, size = 0x4, offset = 0x4, fixed_abs, tag = 'smem constant byte address 0x4 - core index']
  #allocation1 [shape = 'u32[72,128]{1,0:T(1,128)}', space=vmem, size = 0x9000, scoped, tag = 'internal scratch']
  %s0 = inlined_call_operand.hbm [shape: f32[2,256], index: 0, kind: input, shape index: {}]
  %s1 = inlined_call_operand.hbm [shape: bf16[256,256], index: 1, kind: input, shape index: {}]
  %s2 = inlined_call_operand.hbm [shape: f32[1,256], index: 2, kind: input, shape index: {}]
  %s3 = inlined_call_operand.hbm [shape: f32[2,256], index: 3, kind: output, shape index: {}]
  %s4 = sld [smem:[#allocation0]]
  $region34: #{tpu_custom_call.1} parent=0
    _
  %s6 = ssub.s32 1, %s4
  %s7 = scalar_select 0, %s6, %s4
  $region1: #{tpu_custom_call.1} parent=0
    #allocation2 [shape = 'u8[2048]{0}', space=vmem, size = 0x800, scoped, tag = 'input window, operand 0, single buffered']
    #allocation3 [shape = 's32[1]{0}', space=sflag, size = 0x4, scoped, tag = 'scoped memory for tpu_custom_call.1']
    #allocation4 [shape = 's32[1]{0}', space=sflag, size = 0x4, scoped, tag = 'scoped memory for tpu_custom_call.1']
    #allocation5 [shape = 'u8[131072]{0}', space=vmem, size = 0x20000, scoped, tag = 'input window, operand 1, single buffered']
    #allocation6 [shape = 's32[1]{0}', space=sflag, size = 0x4, scoped, tag = 'scoped memory for tpu_custom_call.1']
    #allocation7 [shape = 'u8[1024]{0}', space=vmem, size = 0x400, scoped, tag = 'input window, operand 2, single buffered']
    #allocation8 [shape = 'u8[2048]{0}', space=vmem, size = 0x800, scoped, tag = 'output window, operand 0, single buffered']
    %8 = vsyncpa [#allocation3], 0
    %9 = vsyncpa [#allocation6], 0
    %10 = vsyncpa [#allocation4], 0
    // Predicated region
    $region2: #{tpu_custom_call.1} parent=1 // pred_check
      _
    $region3: #{tpu_custom_call.1} parent=1 // pred_check_branch
      %12 = sbr.rel (0) target = $region5
    $region4: #{tpu_custom_call.1} parent=1 // pred_region
      %14 = vsyncadd [#allocation3], 0
      %s16 = sshll.u32 %s0, 4
      %s17 = int_to_ptr.hbm [resolvable:$true] %s16
      %s18 = sshll.u32 [#allocation2], 4
      %s19 = int_to_ptr.vmem [resolvable:$true] %s18
      %21 = dma.hbm_to_vmem [thread:$0]  %s17, 64, %s19, [#allocation3]
    $region5: #{tpu_custom_call.1} parent=1 // pred_fallthru
      _
    // Predicated region
    $region6: #{tpu_custom_call.1} parent=1 // pred_check
      _
    $region7: #{tpu_custom_call.1} parent=1 // pred_check_branch
      %23 = sbr.rel (0) target = $region9
    $region8: #{tpu_custom_call.1} parent=1 // pred_region
      %25 = vsyncadd [#allocation6], 0
      %s26 = sshll.u32 %s1, 4
      %s27 = int_to_ptr.hbm [resolvable:$true] %s26
      %s28 = sshll.u32 [#allocation5], 4
      %s29 = int_to_ptr.vmem [resolvable:$true] %s28
      %34 = dma.hbm_to_vmem [thread:$0]  %s27, 4096, %s29, [#allocation6], 128, 128, 8
    $region9: #{tpu_custom_call.1} parent=1 // pred_fallthru
      _
    // Predicated region
    $region10: #{tpu_custom_call.1} parent=1 // pred_check
      _
    $region11: #{tpu_custom_call.1} parent=1 // pred_check_branch
      %36 = sbr.rel (0) target = $region13
    $region12: #{tpu_custom_call.1} parent=1 // pred_region
      %38 = vsyncadd [#allocation6], 0
      %s40 = sshll.u32 %s2, 4
      %s41 = int_to_ptr.hbm [resolvable:$true] %s40
      %s42 = sshll.u32 [#allocation7], 4
      %s43 = int_to_ptr.vmem [resolvable:$true] %s42
      %45 = dma.hbm_to_vmem [thread:$0]  %s41, 32, %s43, [#allocation6]
    $region13: #{tpu_custom_call.1} parent=1 // pred_fallthru
      _
    // Predicated region
    $region14: #{tpu_custom_call.1} parent=1 // pred_check
      _
    $region15: #{tpu_custom_call.1} parent=1 // pred_check_branch
      %47 = sbr.rel (0) target = $region17
    $region16: #{tpu_custom_call.1} parent=1 // pred_region
      %49 = dma.done [#allocation3], 64
    $region17: #{tpu_custom_call.1} parent=1 // pred_fallthru
      _
    // Predicated region
    $region18: #{tpu_custom_call.1} parent=1 // pred_check
      _
    $region19: #{tpu_custom_call.1} parent=1 // pred_check_branch
      %51 = sbr.rel (0) target = $region21
    $region20: #{tpu_custom_call.1} parent=1 // pred_region
      %53 = dma.done [#allocation6], 4096
    $region21: #{tpu_custom_call.1} parent=1 // pred_fallthru
      _
    // Predicated region
    $region22: #{tpu_custom_call.1} parent=1 // pred_check
      _
    $region23: #{tpu_custom_call.1} parent=1 // pred_check_branch
      %55 = sbr.rel (0) target = $region25
    $region24: #{tpu_custom_call.1} parent=1 // pred_region
      %57 = dma.done [#allocation6], 32
    $region25: #{tpu_custom_call.1} parent=1 // pred_fallthru
      _
    %v58 = vld [vmem:[#allocation2] sm:$0xf]
    %60 = vst [vmem:[#allocation1] ss:$4 sm:$0xff] %v58
    %v61 = vld.sshfl [vmem:[#allocation1] sm:$0xff pattern:$0x73625140]
    %v62 = vld.sshfl [vmem:[#allocation1 + $0x8] sm:$0xff pattern:$0x73625140]
    %v65 = vpack.c.bf16 %v61, %v61
    %v66 = vpack.c.bf16 %v62, %v62
    %v67 = vld [vmem:[#allocation5] sm:$0xff]
    %v68 = vld [vmem:[#allocation5 + $0x8] sm:$0xff]
    %v69 = vld [vmem:[#allocation5 + $0x10] sm:$0xff]
    %v70 = vld [vmem:[#allocation5 + $0x18] sm:$0xff]
    %v71 = vld [vmem:[#allocation5 + $0x20] sm:$0xff]
    %v72 = vld [vmem:[#allocation5 + $0x28] sm:$0xff]
    %v73 = vld [vmem:[#allocation5 + $0x30] sm:$0xff]
    %v74 = vld [vmem:[#allocation5 + $0x38] sm:$0xff]
    %v75 = vld [vmem:[#allocation5 + $0x40] sm:$0xff]
    %v76 = vld [vmem:[#allocation5 + $0x48] sm:$0xff]
    %v77 = vld [vmem:[#allocation5 + $0x50] sm:$0xff]
    %v78 = vld [vmem:[#allocation5 + $0x58] sm:$0xff]
    %v79 = vld [vmem:[#allocation5 + $0x60] sm:$0xff]
    %v80 = vld [vmem:[#allocation5 + $0x68] sm:$0xff]
    %v81 = vld [vmem:[#allocation5 + $0x70] sm:$0xff]
    %v82 = vld [vmem:[#allocation5 + $0x78] sm:$0xff]
    %v83 = vld [vmem:[#allocation5 + $0x80] sm:$0xff]
    %v84 = vld [vmem:[#allocation5 + $0x88] sm:$0xff]
    %v85 = vld [vmem:[#allocation5 + $0x90] sm:$0xff]
    %v86 = vld [vmem:[#allocation5 + $0x98] sm:$0xff]
    %v87 = vld [vmem:[#allocation5 + $0xa0] sm:$0xff]
    %v88 = vld [vmem:[#allocation5 + $0xa8] sm:$0xff]
    %v89 = vld [vmem:[#allocation5 + $0xb0] sm:$0xff]
    %v90 = vld [vmem:[#allocation5 + $0xb8] sm:$0xff]
    %v91 = vld [vmem:[#allocation5 + $0xc0] sm:$0xff]
    %v92 = vld [vmem:[#allocation5 + $0xc8] sm:$0xff]
    %v93 = vld [vmem:[#allocation5 + $0xd0] sm:$0xff]
    %v94 = vld [vmem:[#allocation5 + $0xd8] sm:$0xff]
    %v95 = vld [vmem:[#allocation5 + $0xe0] sm:$0xff]
    %v96 = vld [vmem:[#allocation5 + $0xe8] sm:$0xff]
    %v97 = vld [vmem:[#allocation5 + $0xf0] sm:$0xff]
    %v98 = vld [vmem:[#allocation5 + $0xf8] sm:$0xff]
    %v99 = vld [vmem:[#allocation7] sm:$0x3]
    %v101 = vperm.slane %v99, 0
    %v102 = vperm.slane %v99, 1
    %v137 = vunpack.c.l.b16 %v67
    %v138 = vunpack.c.h.b16 %v67
    %v139 = vunpack.c.l.b16 %v68
    %v140 = vunpack.c.h.b16 %v68
    %v141 = vunpack.c.l.b16 %v69
    %v142 = vunpack.c.h.b16 %v69
    %v143 = vunpack.c.l.b16 %v70
    %v144 = vunpack.c.h.b16 %v70
    %v145 = vunpack.c.l.b16 %v71
    %v146 = vunpack.c.h.b16 %v71
    %v147 = vunpack.c.l.b16 %v72
    %v148 = vunpack.c.h.b16 %v72
    %v149 = vunpack.c.l.b16 %v73
    %v150 = vunpack.c.h.b16 %v73
    %v151 = vunpack.c.l.b16 %v74
    %v152 = vunpack.c.h.b16 %v74
    %v153 = vunpack.c.l.b16 %v75
    %v154 = vunpack.c.h.b16 %v75
    %v155 = vunpack.c.l.b16 %v76
    %v156 = vunpack.c.h.b16 %v76
    %v157 = vunpack.c.l.b16 %v77
    %v158 = vunpack.c.h.b16 %v77
    %v159 = vunpack.c.l.b16 %v78
    %v160 = vunpack.c.h.b16 %v78
    %v161 = vunpack.c.l.b16 %v79
    %v162 = vunpack.c.h.b16 %v79
    %v163 = vunpack.c.l.b16 %v80
    %v164 = vunpack.c.h.b16 %v80
    %v165 = vunpack.c.l.b16 %v81
    %v166 = vunpack.c.h.b16 %v81
    %v167 = vunpack.c.l.b16 %v82
    %v168 = vunpack.c.h.b16 %v82
    %v169 = vunpack.c.l.b16 %v83
    %v170 = vunpack.c.h.b16 %v83
    %v171 = vunpack.c.l.b16 %v84
    %v172 = vunpack.c.h.b16 %v84
    %v173 = vunpack.c.l.b16 %v85
    %v174 = vunpack.c.h.b16 %v85
    %v175 = vunpack.c.l.b16 %v86
    %v176 = vunpack.c.h.b16 %v86
    %v177 = vunpack.c.l.b16 %v87
    %v178 = vunpack.c.h.b16 %v87
    %v179 = vunpack.c.l.b16 %v88
    %v180 = vunpack.c.h.b16 %v88
    %v181 = vunpack.c.l.b16 %v89
    %v182 = vunpack.c.h.b16 %v89
    %v183 = vunpack.c.l.b16 %v90
    %v184 = vunpack.c.h.b16 %v90
    %v185 = vunpack.c.l.b16 %v91
    %v186 = vunpack.c.h.b16 %v91
    %v187 = vunpack.c.l.b16 %v92
    %v188 = vunpack.c.h.b16 %v92
    %v189 = vunpack.c.l.b16 %v93
    %v190 = vunpack.c.h.b16 %v93
    %v191 = vunpack.c.l.b16 %v94
    %v192 = vunpack.c.h.b16 %v94
    %v193 = vunpack.c.l.b16 %v95
    %v194 = vunpack.c.h.b16 %v95
    %v195 = vunpack.c.l.b16 %v96
    %v196 = vunpack.c.h.b16 %v96
    %v197 = vunpack.c.l.b16 %v97
    %v198 = vunpack.c.h.b16 %v97
    %v199 = vunpack.c.l.b16 %v98
    %v200 = vunpack.c.h.b16 %v98
    %v201 = vpack.c.b16 %v139, %v137
    %v202 = vpack.c.b16 %v140, %v138
    %v203 = vpack.c.b16 %v143, %v141
    %v204 = vpack.c.b16 %v144, %v142
    %v205 = vpack.c.b16 %v147, %v145
    %v206 = vpack.c.b16 %v148, %v146
    %v207 = vpack.c.b16 %v151, %v149
    %v208 = vpack.c.b16 %v152, %v150
    %v209 = vpack.c.b16 %v155, %v153
    %v210 = vpack.c.b16 %v156, %v154
    %v211 = vpack.c.b16 %v159, %v157
    %v212 = vpack.c.b16 %v160, %v158
    %v213 = vpack.c.b16 %v163, %v161
    %v214 = vpack.c.b16 %v164, %v162
    %v215 = vpack.c.b16 %v167, %v165
    %v216 = vpack.c.b16 %v168, %v166
    %v217 = vpack.c.b16 %v171, %v169
    %v218 = vpack.c.b16 %v172, %v170
    %v219 = vpack.c.b16 %v175, %v173
    %v220 = vpack.c.b16 %v176, %v174
    %v221 = vpack.c.b16 %v179, %v177
    %v222 = vpack.c.b16 %v180, %v178
    %v223 = vpack.c.b16 %v183, %v181
    %v224 = vpack.c.b16 %v184, %v182
    %v225 = vpack.c.b16 %v187, %v185
    %v226 = vpack.c.b16 %v188, %v186
    %v227 = vpack.c.b16 %v191, %v189
    %v228 = vpack.c.b16 %v192, %v190
    %v229 = vpack.c.b16 %v195, %v193
    %v230 = vpack.c.b16 %v196, %v194
    %v231 = vpack.c.b16 %v199, %v197
    %v232 = vpack.c.b16 %v200, %v198
    %265 = vmatpush.bf16.msra.mxu0 %v215
    %266 = vmatpush.bf16.msra.mxu0 %v213
    %267 = vmatpush.bf16.msra.mxu0 %v211
    %268 = vmatpush.bf16.msra.mxu0 %v209
    %269 = vmatpush.bf16.msra.mxu0 %v207
    %270 = vmatpush.bf16.msra.mxu0 %v205
    %271 = vmatpush.bf16.msra.mxu0 %v203
    %272 = vmatpush.bf16.msra.mxu0 %v201
    %273 = vmatmul.bf16.gmra.mxu0 %v65
    %v274 = vpop.f32.mrf.mxu0
    %v275 = vadd.f32 %v101, %v274
    %v276 = vpop.f32.mrf.mxu0
    %277 = vdwg.mxu0
    %278 = vmatpush.bf16.msra.mxu0 %v231
    %279 = vmatpush.bf16.msra.mxu0 %v229
    %280 = vmatpush.bf16.msra.mxu0 %v227
    %281 = vmatpush.bf16.msra.mxu0 %v225
    %282 = vmatpush.bf16.msra.mxu0 %v223
    %283 = vmatpush.bf16.msra.mxu0 %v221
    %284 = vmatpush.bf16.msra.mxu0 %v219
    %285 = vmatpush.bf16.msra.mxu0 %v217
    %286 = vmatmul.bf16.gmra.mxu0 %v66
    %v287 = vpop.f32.mrf.mxu0
    %v288 = vadd.f32 %v275, %v287
    %v289 = vpop.f32.mrf.mxu0
    %290 = vdwg.mxu0
    %291 = vmatpush.bf16.msra.mxu0 %v216
    %292 = vmatpush.bf16.msra.mxu0 %v214
    %293 = vmatpush.bf16.msra.mxu0 %v212
    %294 = vmatpush.bf16.msra.mxu0 %v210
    %295 = vmatpush.bf16.msra.mxu0 %v208
    %296 = vmatpush.bf16.msra.mxu0 %v206
    %297 = vmatpush.bf16.msra.mxu0 %v204
    %298 = vmatpush.bf16.msra.mxu0 %v202
    %299 = vmatmul.bf16.gmra.mxu0 %v65
    %v300 = vpop.f32.mrf.mxu0
    %v301 = vadd.f32 %v102, %v300
    %v302 = vpop.f32.mrf.mxu0
    %303 = vdwg.mxu0
    %304 = vmatpush.bf16.msra.mxu0 %v232
    %305 = vmatpush.bf16.msra.mxu0 %v230
    %306 = vmatpush.bf16.msra.mxu0 %v228
    %307 = vmatpush.bf16.msra.mxu0 %v226
    %308 = vmatpush.bf16.msra.mxu0 %v224
    %309 = vmatpush.bf16.msra.mxu0 %v222
    %310 = vmatpush.bf16.msra.mxu0 %v220
    %311 = vmatpush.bf16.msra.mxu0 %v218
    %312 = vmatmul.bf16.gmra.mxu0 %v66
    %v313 = vpop.f32.mrf.mxu0
    %v314 = vadd.f32 %v301, %v313
    %v315 = vpop.f32.mrf.mxu0
    %316 = vdwg.mxu0
    %v319 = vrot.slane %v314, 6
    %vm320 = vcmask 1041408
    %v321 = vsel %vm320, %v288, %v319
    %323 = vst [vmem:[#allocation8] sm:$0xf] %v321
    // Predicated region
    $region26: #{tpu_custom_call.1} parent=1 // pred_check
      _
    $region27: #{tpu_custom_call.1} parent=1 // pred_check_branch
      %325 = sbr.rel (0) target = $region29
    $region28: #{tpu_custom_call.1} parent=1 // pred_region
      %327 = vsyncadd [#allocation4], 0
      %s329 = sshll.u32 [#allocation8], 4
      %s330 = int_to_ptr.vmem [resolvable:$true] %s329
      %s331 = sshll.u32 %s3, 4
      %s332 = int_to_ptr.hbm [resolvable:$true] %s331
      %334 = dma.vmem_to_hbm [thread:$0]  %s330, 64, %s332, [#allocation4]
    $region29: #{tpu_custom_call.1} parent=1 // pred_fallthru
      _
    // Predicated region
    $region30: #{tpu_custom_call.1} parent=1 // pred_check
      _
    $region31: #{tpu_custom_call.1} parent=1 // pred_check_branch
      %336 = sbr.rel (0) target = $region33
    $region32: #{tpu_custom_call.1} parent=1 // pred_region
      %338 = dma.done [#allocation4], 64
    $region33: #{tpu_custom_call.1} parent=1 // pred_fallthru
      _
    %339 = vsyncpa [#allocation3], 1
    %340 = vsyncpa [#allocation6], 1
    %341 = vsyncpa [#allocation4], 1

</llo_original>
